<compile_context>
chip_gen: v7x
topology: tpu7x:2x2x1
jax: 0.10.0
libtpu: 0.0.40
codegen_flags: <defaults>
</compile_context>

<pallas_src>
import math

import jax
import jax.numpy as jnp
from jax.experimental import pallas as pl
from jax.experimental.pallas import tpu as pltpu


def _round_up(x, m):
    return ((x + m - 1) // m) * m


def _pad_to(x, target_shape):
    pads = [(0, t - s) for s, t in zip(x.shape, target_shape)]
    return jnp.pad(x, pads)


# ----------------------------------------------------------------------------
# Pallas kernel: whole batch-dependent filter/smoother as two affine maps.
# ----------------------------------------------------------------------------
def hmm_affine_kernel(y_ref,      # [Cb, tb]  stacked obs + bias row (+ zero pad)
                      wm_ref,     # [Rm, Cb]  folded smoother weights (mutT)
                      wy_ref,     # [Ry, Cb]  folded one-step-pred weights (yhat)
                      mutT_ref,   # out [Rm, tb]
                      yhat_ref):  # out [Ry, tb]
    y = y_ref[...]
    mutT_ref[...] = jnp.dot(wm_ref[...], y, preferred_element_type=jnp.float32)
    yhat_ref[...] = jnp.dot(wy_ref[...], y, preferred_element_type=jnp.float32)


def _select_tile_b(Bp, Rm, Ry, Cb, budget_bytes=40 * 1024 * 1024):
    """Largest lane-dense batch tile under a VMEM budget, preferring >=2 tiles
    so v7x megacore gets work on both TensorCores."""
    tile = 128
    for cand in (256, 512):
        if Bp % cand:
            continue
        if Bp // cand < 2:
            continue
        need = 4 * (2 * (Cb + Rm + Ry) * cand + 2 * (Rm + Ry) * Cb)
        if need <= budget_bytes:
            tile = cand
    return tile


def run_hmm_kernel(y_aug, w_mu, w_yh, *, tile_b=None):
    Cb, Bp = y_aug.shape
    Rm = w_mu.shape[0]
    Ry = w_yh.shape[0]
    if tile_b is None:
        tile_b = _select_tile_b(Bp, Rm, Ry, Cb)
    assert Bp % tile_b == 0
    nb = Bp // tile_b

    # Explicit VMEM budget: double-buffered y / output tiles + double-buffered
    # constant weight slabs, with 2x headroom; capped at 64 MiB (v7x physical).
    footprint = 4 * (2 * (Cb + Rm + Ry) * tile_b + 2 * (Rm + Ry) * Cb)
    vmem_limit = int(min(64 * 1024 * 1024, max(2 * footprint, 32 * 1024 * 1024)))

    grid_spec = pltpu.PrefetchScalarGridSpec(
        num_scalar_prefetch=0,
        grid=(nb,),
        in_specs=[pl.BlockSpec((Cb, tile_b), lambda b: (0, b)),
                  pl.BlockSpec((Rm, Cb), lambda b: (0, 0)),
                  pl.BlockSpec((Ry, Cb), lambda b: (0, 0))],
        out_specs=(pl.BlockSpec((Rm, tile_b), lambda b: (0, b)),
                   pl.BlockSpec((Ry, tile_b), lambda b: (0, b))))

    return pl.pallas_call(
        hmm_affine_kernel,
        out_shape=(jax.ShapeDtypeStruct((Rm, Bp), jnp.float32),
                   jax.ShapeDtypeStruct((Ry, Bp), jnp.float32)),
        grid_spec=grid_spec,
        compiler_params=pltpu.CompilerParams(
            dimension_semantics=("parallel",),
            vmem_limit_bytes=vmem_limit),
    )(y_aug, w_mu, w_yh)


# ----------------------------------------------------------------------------
# Plain-JAX glue: batch-independent linear algebra + weight folding.
# ----------------------------------------------------------------------------
def init_params(key, num_states, num_outputs):
    S, O = num_states, num_outputs
    ks = jax.random.split(key, 6)

    def chol_psd(m, eps=1e-4):
        return jnp.linalg.cholesky(m + eps * jnp.eye(m.shape[0], dtype=m.dtype))

    a = (1.0 / S) * jax.random.normal(ks[0], (S, S), jnp.float32)
    q_sqrt = (1.0 / S) * jax.random.normal(ks[1], (S, S), jnp.float32)
    q_ch = jnp.tril(chol_psd(q_sqrt @ q_sqrt.T))
    p0_sqrt = jax.random.normal(ks[2], (S, S), jnp.float32)
    p0_ch = jnp.tril(chol_psd(p0_sqrt @ p0_sqrt.T))
    mu0 = 1.0 + jax.random.normal(ks[3], (S,), jnp.float32)
    b = (1.0 / math.sqrt(O)) * jax.random.normal(ks[4], (O, S), jnp.float32)
    r_sqrt = (1.0 / math.sqrt(O * S)) * jax.random.normal(ks[5], (O, O), jnp.float32)
    r_ch = jnp.tril(chol_psd(r_sqrt @ r_sqrt.T))
    return dict(a_tensor=a, q_chtril_tensor=q_ch, mat_p0_chtril=p0_ch,
                mat_mu0=mu0, mat_b=b, mat_r_chtril=r_ch)


def model_hmm_forward(params, y):
    """Equivalent of Model_hmm.forward.

    y: [B, L, O, 1]
    returns: (mutT [B,L,S,1], ptT [L,S,S], yhat [B,L,O,1], sig [L,O,O], h [L-1,S,S])
    """
    a = params['a_tensor'].astype(jnp.float32)
    q_ch = jnp.tril(params['q_chtril_tensor']).astype(jnp.float32)
    p0_ch = params['mat_p0_chtril'].astype(jnp.float32)
    mu0 = params['mat_mu0'].astype(jnp.float32)
    bmat = params['mat_b'].astype(jnp.float32)
    r_ch = jnp.tril(params['mat_r_chtril']).astype(jnp.float32)

    S = a.shape[0]
    O = bmat.shape[0]
    Bsz, L = y.shape[0], y.shape[1]
    eye_s = jnp.eye(S, dtype=jnp.float32)

    q_t = q_ch @ q_ch.T
    mat_r = r_ch @ r_ch.T
    p_0 = p0_ch @ p0_ch.T

    # ---- forward (roll_fwd): batch-independent covariance recursion ----
    def data_update_mats(p_pred):
        sig = mat_r + bmat @ p_pred @ bmat.T
        sig = (sig + sig.T) / 2
        pbT = p_pred @ bmat.T
        chol_sig = jnp.linalg.cholesky(sig)
        g = jax.scipy.linalg.cho_solve((chol_sig, True), pbT.T).T   # Kalman gain
        imgb = eye_s - g @ bmat
        p_filt = imgb @ p_pred
        p_filt = (p_filt + p_filt.T) / 2
        return imgb, g, p_filt, sig

    imgb_list, g_list, sig_list, p_tt_list, h_list = [], [], [], [], []
    imgb, g, p_filt, sig = data_update_mats(p_0)
    imgb_list.append(imgb); g_list.append(g)
    p_tt_list.append(p_filt); sig_list.append(sig)
    for _t in range(1, L):
        p_pred = q_t + a @ p_filt @ a.T
        h_list.append(p_filt @ a.T @ jnp.linalg.pinv(p_pred))
        imgb, g, p_filt, sig = data_update_mats(p_pred)
        imgb_list.append(imgb); g_list.append(g)
        p_tt_list.append(p_filt); sig_list.append(sig)

    p_tt_seq = jnp.stack(p_tt_list)                      # [L,S,S]
    sig_seq = jnp.stack(sig_list)                        # [L,O,O]
    h_seq = (jnp.stack(h_list) if L > 1
             else jnp.zeros((0, S, S), jnp.float32))     # [L-1,S,S]

    # ---- backward (roll_bwd): batch-independent information recursion ----
    qinv = jnp.linalg.pinv(q_t)
    rinv = jnp.linalg.pinv(mat_r)
    btxrinv = bmat.T @ rinv                              # [S,O]
    gamma = jnp.zeros((S, S), jnp.float32)
    gamma_list = [gamma]
    m_list = []                                          # M_j, bwd-step indexed
    for _k in range(L - 1):
        gamma_tt = gamma + btxrinv @ bmat
        pi_t = gamma_tt + qinv
        piinvxqinv = jnp.linalg.pinv(pi_t) @ qinv
        gamma = a.T @ qinv @ (eye_s - piinvxqinv) @ a
        gamma_list.append(gamma)
        m_list.append(a.T @ piinvxqinv.T)
    gamma_seq = jnp.stack(gamma_list)[::-1]              # time-indexed [L,S,S]

    # ---- merge (smoother), batch-independent part ----
    p_inv_seq = jnp.linalg.pinv(p_tt_seq)                       # [L,S,S]
    ptT_seq = jnp.linalg.pinv(gamma_seq + p_inv_seq)            # [L,S,S]
    pp_seq = jnp.einsum('tij,tjk->tik', ptT_seq, p_inv_seq)     # PtT @ Ptt^-1

    # ---- fold the whole batch-dependent recursion into affine weights ----
    ba = bmat @ a
    c0 = imgb_list[0] @ mu0                              # (I - G_0 B) mu0
    n_list = [m_list[j] @ btxrinv for j in range(L - 1)]  # N_j = M_j B^T R^-1

    # Phi[t][k] = F_t F_{t-1} ... F_{k+1}, with F_t = (I-G_tB)A and Phi[t][t]=I
    phi = [[None] * L for _ in range(L)]
    for t in range(L):
        phi[t][t] = eye_s
        if t > 0:
            f_t = imgb_list[t] @ a
            for k in range(t - 1, -1, -1):
                phi[t][k] = f_t @ phi[t - 1][k]

    # Theta[m][j] = M_m M_{m-1} ... M_{j+1}, Theta[j][j] = I
    theta = [[None] * (L - 1) for _ in range(L - 1)]
    for m in range(L - 1):
        theta[m][m] = eye_s
        for j in range(m - 1, -1, -1):
            theta[m][j] = m_list[m] @ theta[m - 1][j]

    zero_oo = jnp.zeros((O, O), jnp.float32)
    wm_blocks, wy_blocks, cm_rows, cy_rows = [], [], [], []
    for t in range(L):
        row_m = []
        for k in range(L):
            if k <= t:      # forward (filtered-mean) contribution through PP_t
                row_m.append(pp_seq[t] @ (phi[t][k] @ g_list[k]))
            else:           # backward (ksi) contribution through PtT_t
                row_m.append(ptT_seq[t]
                             @ (theta[L - 2 - t][L - 1 - k] @ n_list[L - 1 - k]))
        wm_blocks.append(row_m)
        cm_rows.append(pp_seq[t] @ (phi[t][0] @ c0))

        row_y = []
        for k in range(L):
            if t >= 1 and k <= t - 1:
                row_y.append(ba @ (phi[t - 1][k] @ g_list[k]))
            else:
                row_y.append(zero_oo)
        wy_blocks.append(row_y)
        cy_rows.append(bmat @ mu0 if t == 0 else ba @ (phi[t - 1][0] @ c0))

    w_mu = jnp.block(wm_blocks)                   # [L*S, L*O]
    w_yh = jnp.block(wy_blocks)                   # [L*O, L*O]
    c_mu = jnp.concatenate(cm_rows)               # [L*S]
    c_yh = jnp.concatenate(cy_rows)               # [L*O]

    # ---- pad to MXU / lane-aligned shapes (zero padding in HBM => exact) ----
    LS, LO = L * S, L * O
    Rm = _round_up(LS, 8)
    Ry = _round_up(LO, 8)
    Cb = _round_up(LO + 1, 128)     # contraction dim: multiple of 128
    Bp = _round_up(Bsz, 128)

    wm_p = _pad_to(jnp.concatenate([w_mu, c_mu[:, None]], axis=1), (Rm, Cb))
    wy_p = _pad_to(jnp.concatenate([w_yh, c_yh[:, None]], axis=1), (Ry, Cb))

    y_flat = jnp.transpose(y[..., 0], (1, 2, 0)).reshape(LO, Bsz)
    y_flat = _pad_to(y_flat.astype(jnp.float32), (LO, Bp))
    y_aug = jnp.concatenate(
        [y_flat,
         jnp.ones((1, Bp), jnp.float32),                 # bias row
         jnp.zeros((Cb - LO - 1, Bp), jnp.float32)], axis=0)

    # ---- batch-dependent part: Pallas kernel (2 matmuls per batch tile) ----
    mutT_flat, yhat_flat = run_hmm_kernel(y_aug, wm_p, wy_p)

    mutT = jnp.transpose(mutT_flat[:LS].reshape(L, S, Bp)[:, :, :Bsz],
                         (2, 0, 1))[..., None]           # [B,L,S,1]
    yhat = jnp.transpose(yhat_flat[:LO].reshape(L, O, Bp)[:, :, :Bsz],
                         (2, 0, 1))[..., None]           # [B,L,O,1]
    return mutT, ptT_seq, yhat, sig_seq, h_seq


# ----------------------------------------------------------------------------
# Pure-JAX reference: literal transcription of the PyTorch recursion.
# ----------------------------------------------------------------------------
def reference_forward(params, y):
    a = params['a_tensor'].astype(jnp.float32)
    q_ch = jnp.tril(params['q_chtril_tensor']).astype(jnp.float32)
    q_t = q_ch @ q_ch.T
    r_ch = jnp.tril(params['mat_r_chtril']).astype(jnp.float32)
    mat_r = r_ch @ r_ch.T
    p0_ch = params['mat_p0_chtril'].astype(jnp.float32)
    p_0 = p0_ch @ p0_ch.T
    bmat = params['mat_b'].astype(jnp.float32)
    mu0 = params['mat_mu0'].astype(jnp.float32)

    S = a.shape[0]
    O = bmat.shape[0]
    Bsz, L = y.shape[0], y.shape[1]
    eye_s = jnp.eye(S, dtype=jnp.float32)
    yp = jnp.transpose(y, (1, 0, 2, 3)).astype(jnp.float32)   # [L,B,O,1]

    def data_update(y_t, mu_ttm1, p_ttm1):
        sig = mat_r + bmat @ p_ttm1 @ bmat.T
        sig = (sig + sig.T) / 2
        pbT = p_ttm1 @ bmat.T
        g = jax.scipy.linalg.cho_solve((jnp.linalg.cholesky(sig), True), pbT.T).T
        imgb = eye_s - g @ bmat
        p_tt = imgb @ p_ttm1
        p_tt = (p_tt + p_tt.T) / 2
        mu_tt = imgb @ mu_ttm1 + g @ y_t
        return mu_tt, p_tt, sig

    mu_0 = jnp.broadcast_to(mu0[:, None], (Bsz, S, 1))
    mu_ttm1_list = [mu_0]
    mu_tt, p_tt, sig = data_update(yp[0], mu_0, p_0)
    mu_tt_list, p_tt_list, sig_list, h_list = [mu_tt], [p_tt], [sig], []
    for t in range(1, L):
        p_ttm1 = q_t + a @ p_tt @ a.T
        h_list.append(p_tt @ a.T @ jnp.linalg.pinv(p_ttm1))
        mu_ttm1 = a @ mu_tt
        mu_ttm1_list.append(mu_ttm1)
        mu_tt, p_tt, sig = data_update(yp[t], mu_ttm1, p_ttm1)
        mu_tt_list.append(mu_tt); p_tt_list.append(p_tt); sig_list.append(sig)

    mu_ttm1_tensor = jnp.transpose(jnp.stack(mu_ttm1_list), (1, 0, 2, 3))
    yhat = bmat @ mu_ttm1_tensor                              # [B,L,O,1]
    mu_tt_tensor = jnp.transpose(jnp.stack(mu_tt_list), (1, 0, 2, 3))
    p_tt_tensor = jnp.stack(p_tt_list)
    sig_tensor = jnp.stack(sig_list)
    h_tensor = (jnp.stack(h_list) if L > 1
                else jnp.zeros((0, S, S), jnp.float32))

    # roll_bwd
    qinv = jnp.linalg.pinv(q_t)
    rinv = jnp.linalg.pinv(mat_r)
    gamma = jnp.zeros((S, S), jnp.float32)
    gamma_list = [gamma]
    ksi = jnp.zeros((Bsz, S, 1), jnp.float32)
    ksi_list = [ksi]
    for k in range(L - 1):
        y_t = yp[L - 1 - k]
        btxrinv = bmat.T @ rinv
        gamma_tt = gamma + btxrinv @ bmat
        ksi_tt = ksi + btxrinv @ y_t
        pi_t = gamma_tt + qinv
        piinvxqinv = jnp.linalg.pinv(pi_t) @ qinv
        gamma = a.T @ qinv @ (eye_s - piinvxqinv) @ a
        ksi = a.T @ piinvxqinv.T @ ksi_tt
        ksi_list.append(ksi)
        gamma_list.append(gamma)
    ksi_tensor = jnp.flip(jnp.transpose(jnp.stack(ksi_list), (1, 0, 2, 3)), axis=1)
    gamma_tensor = jnp.flip(jnp.stack(gamma_list), axis=0)

    # merge
    p_inv = jnp.linalg.pinv(p_tt_tensor)
    ptT = jnp.linalg.pinv(gamma_tensor + p_inv)
    mutT = ptT @ (ksi_tensor + p_inv @ mu_tt_tensor)
    return mutT, ptT, yhat, sig_tensor, h_tensor


if __name__ == "__main__":
    key = jax.random.PRNGKey(0)
    num_states, num_outputs, length, batch = 8, 4, 8, 4

    pkey, ykey = jax.random.split(key)
    params = init_params(pkey, num_states, num_outputs)
    y = jax.random.normal(ykey, (batch, length, num_outputs, 1), jnp.float32)

    out = jax.block_until_ready(model_hmm_forward(params, y))
    mutT, ptT, yhat, sig, h = out

    assert mutT.shape == (batch, length, num_states, 1)
    assert ptT.shape == (length, num_states, num_states)
    assert yhat.shape == (batch, length, num_outputs, 1)
    assert sig.shape == (length, num_outputs, num_outputs)
    assert h.shape == (length - 1, num_states, num_states)
    assert all(bool(jnp.all(jnp.isfinite(o))) for o in out)

    # Tolerance-checked comparison against the pure-JAX recursion reference
    # (f32 re-association drift expected ~1e-5; threshold catches real bugs).
    ref = jax.block_until_ready(reference_forward(params, y))

    def _rel_err(x, r):
        return float(jnp.max(jnp.abs(x - r)) / (jnp.max(jnp.abs(r)) + 1e-6))

    for name, got, want in zip(("mutT", "ptT", "yhat", "sig", "h"), out, ref):
        if got.size:
            err = _rel_err(got, want)
            assert err < 5e-3, f"{name} mismatch vs reference: rel err {err}"

    print("KERNEL_OK")
</pallas_src>

<mosaic_0001>
module attributes {stable_mosaic.version = 11 : i64} {
  func.func @hmm_affine_kernel(%arg0: i32, %arg1: memref<128x128xf32, #tpu.memory_space<vmem>>, %arg2: memref<64x128xf32, #tpu.memory_space<vmem>>, %arg3: memref<32x128xf32, #tpu.memory_space<vmem>>, %arg4: memref<64x128xf32, #tpu.memory_space<vmem>>, %arg5: memref<32x128xf32, #tpu.memory_space<vmem>>) attributes {dimension_semantics = [#tpu.dimension_semantics<parallel>], iteration_bounds = array<i64: 1>, scalar_prefetch = 0 : i64, scratch_operands = 0 : i64, tpu.core_type = #tpu.core_type<tc>, window_params = [{transform_indices = @transform_0, window_bounds = array<i64: 128, 128>}, {pipeline_mode = #tpu.pipeline_mode<synchronous>, transform_indices = @transform_1, window_bounds = array<i64: 64, 128>}, {pipeline_mode = #tpu.pipeline_mode<synchronous>, transform_indices = @transform_2, window_bounds = array<i64: 32, 128>}, {transform_indices = @transform_3, window_bounds = array<i64: 64, 128>}, {transform_indices = @transform_4, window_bounds = array<i64: 32, 128>}]} {
    %c0 = arith.constant 0 : index
    %c0_0 = arith.constant 0 : index
    %0 = vector.load %arg1[%c0, %c0_0] : memref<128x128xf32, #tpu.memory_space<vmem>>, vector<128x128xf32>
    %c0_1 = arith.constant 0 : index
    %c0_2 = arith.constant 0 : index
    %1 = vector.load %arg2[%c0_1, %c0_2] : memref<64x128xf32, #tpu.memory_space<vmem>>, vector<64x128xf32>
    %cst = arith.constant dense<0.000000e+00> : vector<64x128xf32>
    %2 = tpu.matmul %1, %0, %cst {dimension_numbers = #tpu.dot_dimension_numbers<[1], [0], [0], [1], [0, 0, 1, 1], [], []>} : vector<64x128xf32>, vector<128x128xf32>, vector<64x128xf32> -> vector<64x128xf32>
    %c0_3 = arith.constant 0 : index
    %c0_4 = arith.constant 0 : index
    %3 = vector.load %arg4[%c0_3, %c0_4] : memref<64x128xf32, #tpu.memory_space<vmem>>, vector<64x128xf32>
    tpu.vector_store %arg4[%c0_3, %c0_4], %2 {strides = array<i32>} : memref<64x128xf32, #tpu.memory_space<vmem>>, vector<64x128xf32>,
    %c0_5 = arith.constant 0 : index
    %c0_6 = arith.constant 0 : index
    %4 = vector.load %arg3[%c0_5, %c0_6] : memref<32x128xf32, #tpu.memory_space<vmem>>, vector<32x128xf32>
    %cst_7 = arith.constant dense<0.000000e+00> : vector<32x128xf32>
    %5 = tpu.matmul %4, %0, %cst_7 {dimension_numbers = #tpu.dot_dimension_numbers<[1], [0], [0], [1], [0, 0, 1, 1], [], []>} : vector<32x128xf32>, vector<128x128xf32>, vector<32x128xf32> -> vector<32x128xf32>
    %c0_8 = arith.constant 0 : index
    %c0_9 = arith.constant 0 : index
    %6 = vector.load %arg5[%c0_8, %c0_9] : memref<32x128xf32, #tpu.memory_space<vmem>>, vector<32x128xf32>
    tpu.vector_store %arg5[%c0_8, %c0_9], %5 {strides = array<i32>} : memref<32x128xf32, #tpu.memory_space<vmem>>, vector<32x128xf32>,
    return
  }
  func.func @transform_0(%arg0: i32) -> (i32, i32) {
    %c0_i32 = arith.constant 0 : i32
    %c0_i32_0 = arith.constant 0 : i32
    return %c0_i32, %arg0 : i32, i32
  }
  func.func @transform_1(%arg0: i32) -> (i32, i32) {
    %c0_i32 = arith.constant 0 : i32
    %c0_i32_0 = arith.constant 0 : i32
    %c0_i32_1 = arith.constant 0 : i32
    return %c0_i32, %c0_i32_0 : i32, i32
  }
  func.func @transform_2(%arg0: i32) -> (i32, i32) {
    %c0_i32 = arith.constant 0 : i32
    %c0_i32_0 = arith.constant 0 : i32
    %c0_i32_1 = arith.constant 0 : i32
    return %c0_i32, %c0_i32_0 : i32, i32
  }
  func.func @transform_3(%arg0: i32) -> (i32, i32) {
    %c0_i32 = arith.constant 0 : i32
    %c0_i32_0 = arith.constant 0 : i32
    return %c0_i32, %arg0 : i32, i32
  }
  func.func @transform_4(%arg0: i32) -> (i32, i32) {
    %c0_i32 = arith.constant 0 : i32
    %c0_i32_0 = arith.constant 0 : i32
    return %c0_i32, %arg0 : i32, i32
  }
}

</mosaic_0001>

<llo_original>
// kernel: tpu_custom_call.1
$region0: #{tpu_custom_call.1}
  #allocation0 [shape = 'u32[]', space=smem, size = 0x4, offset = 0x4, fixed_abs, tag = 'smem constant byte address 0x4 - core index']
  #allocation1 [shape = 'u32[144,128]{1,0:T(1,128)}', space=vmem, size = 0x12000, scoped, tag = 'internal scratch']
  %s0 = inlined_call_operand.hbm [shape: f32[128,128], index: 0, kind: input, shape index: {}]
  %s1 = inlined_call_operand.hbm [shape: f32[64,128], index: 1, kind: input, shape index: {}]
  %s2 = inlined_call_operand.hbm [shape: f32[32,128], index: 2, kind: input, shape index: {}]
  %s3 = inlined_call_operand.hbm [shape: f32[64,128], index: 3, kind: output, shape index: {0}]
  %s4 = inlined_call_operand.hbm [shape: f32[32,128], index: 4, kind: output, shape index: {1}]
  %5 = xla_tuple %s3, %s4
  %s6 = sld [smem:[#allocation0]]
  $region42: #{tpu_custom_call.1} parent=0
    _
  %s8 = ssub.s32 1, %s6
  %s9 = scalar_select 0, %s8, %s6
  $region1: #{tpu_custom_call.1} parent=0
    #allocation2 [shape = 'u8[65536]{0}', space=vmem, size = 0x10000, scoped, tag = 'input window, operand 0, single buffered']
    #allocation3 [shape = 's32[1]{0}', space=sflag, size = 0x4, scoped, tag = 'scoped memory for tpu_custom_call.1']
    #allocation4 [shape = 's32[1]{0}', space=sflag, size = 0x4, scoped, tag = 'scoped memory for tpu_custom_call.1']
    #allocation5 [shape = 'u8[32768]{0}', space=vmem, size = 0x8000, scoped, tag = 'input window, operand 1, single buffered']
    #allocation6 [shape = 's32[1]{0}', space=sflag, size = 0x4, scoped, tag = 'scoped memory for tpu_custom_call.1']
    #allocation7 [shape = 'u8[16384]{0}', space=vmem, size = 0x4000, scoped, tag = 'input window, operand 2, single buffered']
    #allocation8 [shape = 'u8[32768]{0}', space=vmem, size = 0x8000, scoped, tag = 'output window, operand 0, single buffered']
    #allocation9 [shape = 'u8[16384]{0}', space=vmem, size = 0x4000, scoped, tag = 'output window, operand 1, single buffered']
    #allocation10 [shape = 's32[1]{0}', space=sflag, size = 0x4, scoped, tag = 'scoped memory for tpu_custom_call.1']
    %10 = vsyncpa [#allocation3], 0
    %11 = vsyncpa [#allocation6], 0
    %12 = vsyncpa [#allocation4], 0
    %13 = vsyncpa [#allocation10], 0
    // Predicated region
    $region2: #{tpu_custom_call.1} parent=1 // pred_check
      _
    $region3: #{tpu_custom_call.1} parent=1 // pred_check_branch
      %15 = sbr.rel (0) target = $region5
    $region4: #{tpu_custom_call.1} parent=1 // pred_region
      %s17 = ssub.s32 2048, 2048
      %18 = vsyncadd [#allocation3], %s17
      %s19 = sshll.u32 [#allocation2], 4
      %s20 = int_to_ptr.vmem [resolvable:$true] %s19
      %25 = dma.hbm_to_vmem [thread:$0]  %s0, 2048, %s20, [#allocation3], 128, 128, 8
    $region5: #{tpu_custom_call.1} parent=1 // pred_fallthru
      _
    // Predicated region
    $region6: #{tpu_custom_call.1} parent=1 // pred_check
      _
    $region7: #{tpu_custom_call.1} parent=1 // pred_check_branch
      %27 = sbr.rel (0) target = $region9
    $region8: #{tpu_custom_call.1} parent=1 // pred_region
      %s29 = ssub.s32 1024, 1024
      %30 = vsyncadd [#allocation6], %s29
      %s31 = sshll.u32 [#allocation5], 4
      %s32 = int_to_ptr.vmem [resolvable:$true] %s31
      %37 = dma.hbm_to_vmem [thread:$0]  %s1, 1024, %s32, [#allocation6], 128, 128, 8
    $region9: #{tpu_custom_call.1} parent=1 // pred_fallthru
      _
    // Predicated region
    $region10: #{tpu_custom_call.1} parent=1 // pred_check
      _
    $region11: #{tpu_custom_call.1} parent=1 // pred_check_branch
      %39 = sbr.rel (0) target = $region13
    $region12: #{tpu_custom_call.1} parent=1 // pred_region
      %s41 = ssub.s32 512, 512
      %42 = vsyncadd [#allocation6], %s41
      %s43 = sshll.u32 [#allocation7], 4
      %s44 = int_to_ptr.vmem [resolvable:$true] %s43
      %49 = dma.hbm_to_vmem [thread:$0]  %s2, 512, %s44, [#allocation6], 128, 128, 8
    $region13: #{tpu_custom_call.1} parent=1 // pred_fallthru
      _
    // Predicated region
    $region14: #{tpu_custom_call.1} parent=1 // pred_check
      _
    $region15: #{tpu_custom_call.1} parent=1 // pred_check_branch
      %51 = sbr.rel (0) target = $region17
    $region16: #{tpu_custom_call.1} parent=1 // pred_region
      %52 = dma.done [#allocation3], 2048
    $region17: #{tpu_custom_call.1} parent=1 // pred_fallthru
      _
    // Predicated region
    $region18: #{tpu_custom_call.1} parent=1 // pred_check
      _
    $region19: #{tpu_custom_call.1} parent=1 // pred_check_branch
      %54 = sbr.rel (0) target = $region21
    $region20: #{tpu_custom_call.1} parent=1 // pred_region
      %55 = dma.done [#allocation6], 1024
    $region21: #{tpu_custom_call.1} parent=1 // pred_fallthru
      _
    // Predicated region
    $region22: #{tpu_custom_call.1} parent=1 // pred_check
      _
    $region23: #{tpu_custom_call.1} parent=1 // pred_check_branch
      %57 = sbr.rel (0) target = $region25
    $region24: #{tpu_custom_call.1} parent=1 // pred_region
      %58 = dma.done [#allocation6], 512
    $region25: #{tpu_custom_call.1} parent=1 // pred_fallthru
      _
    %v59 = vld [vmem:[#allocation2] sm:$0xff]
    %v60 = vld [vmem:[#allocation2 + $0x8] sm:$0xff]
    %v61 = vld [vmem:[#allocation2 + $0x10] sm:$0xff]
    %v62 = vld [vmem:[#allocation2 + $0x18] sm:$0xff]
    %v63 = vld [vmem:[#allocation2 + $0x20] sm:$0xff]
    %v64 = vld [vmem:[#allocation2 + $0x28] sm:$0xff]
    %v65 = vld [vmem:[#allocation2 + $0x30] sm:$0xff]
    %v66 = vld [vmem:[#allocation2 + $0x38] sm:$0xff]
    %v67 = vld [vmem:[#allocation2 + $0x40] sm:$0xff]
    %v68 = vld [vmem:[#allocation2 + $0x48] sm:$0xff]
    %v69 = vld [vmem:[#allocation2 + $0x50] sm:$0xff]
    %v70 = vld [vmem:[#allocation2 + $0x58] sm:$0xff]
    %v71 = vld [vmem:[#allocation2 + $0x60] sm:$0xff]
    %v72 = vld [vmem:[#allocation2 + $0x68] sm:$0xff]
    %v73 = vld [vmem:[#allocation2 + $0x70] sm:$0xff]
    %v74 = vld [vmem:[#allocation2 + $0x78] sm:$0xff]
    %v75 = vld [vmem:[#allocation5] sm:$0xff]
    %v76 = vld [vmem:[#allocation5 + $0x8] sm:$0xff]
    %v77 = vld [vmem:[#allocation5 + $0x10] sm:$0xff]
    %v78 = vld [vmem:[#allocation5 + $0x18] sm:$0xff]
    %v79 = vld [vmem:[#allocation5 + $0x20] sm:$0xff]
    %v80 = vld [vmem:[#allocation5 + $0x28] sm:$0xff]
    %v81 = vld [vmem:[#allocation5 + $0x30] sm:$0xff]
    %v82 = vld [vmem:[#allocation5 + $0x38] sm:$0xff]
    %83 = vmatprep.subr.mxu0 0.0
    %84 = vmatpush1.msra.mxu0 %v59
    %85 = vmatprep.subr.mxu0 0.0
    %86 = vmatpush1.msra.mxu0 %v60
    %87 = vmatprep.subr.mxu0 0.0
    %88 = vmatpush1.msra.mxu0 %v61
    %89 = vmatprep.subr.mxu0 0.0
    %90 = vmatpush1.msra.mxu0 %v62
    %91 = vmatprep.subr.mxu0 0.0
    %92 = vmatpush1.msra.mxu0 %v63
    %93 = vmatprep.subr.mxu0 0.0
    %94 = vmatpush1.msra.mxu0 %v64
    %95 = vmatprep.subr.mxu0 0.0
    %96 = vmatpush1.msra.mxu0 %v65
    %97 = vmatprep.subr.mxu0 0.0
    %98 = vmatpush1.msra.mxu0 %v66
    %99 = vmatprep.subr.mxu0 0.0
    %100 = vmatpush1.msra.mxu0 %v67
    %101 = vmatprep.subr.mxu0 0.0
    %102 = vmatpush1.msra.mxu0 %v68
    %103 = vmatprep.subr.mxu0 0.0
    %104 = vmatpush1.msra.mxu0 %v69
    %105 = vmatprep.subr.mxu0 0.0
    %106 = vmatpush1.msra.mxu0 %v70
    %107 = vmatprep.subr.mxu0 0.0
    %108 = vmatpush1.msra.mxu0 %v71
    %109 = vmatprep.subr.mxu0 0.0
    %110 = vmatpush1.msra.mxu0 %v72
    %111 = vmatprep.subr.mxu0 0.0
    %112 = vmatpush1.msra.mxu0 %v73
    %113 = vmatprep.subr.mxu0 0.0
    %114 = vmatpush1.msra.mxu0 %v74
    %115 = vmatprep.subr.mxu0 0.0
    %116 = vmatpush1.msra.mxu0 0.0
    %117 = vmatprep.subr.mxu0 0.0
    %118 = vmatpush1.msra.mxu0 0.0
    %119 = vmatprep.subr.mxu0 0.0
    %120 = vmatpush1.msra.mxu0 0.0
    %121 = vmatprep.subr.mxu0 0.0
    %122 = vmatpush1.msra.mxu0 0.0
    %123 = vmatprep.subr.mxu0 0.0
    %124 = vmatpush1.msra.mxu0 0.0
    %125 = vmatprep.subr.mxu0 0.0
    %126 = vmatpush1.msra.mxu0 0.0
    %127 = vmatprep.subr.mxu0 0.0
    %128 = vmatpush1.msra.mxu0 0.0
    %129 = vmatprep.subr.mxu0 0.0
    %130 = vmatpush1.msra.mxu0 0.0
    %131 = vmatprep.subr.mxu0 0.0
    %132 = vmatpush1.msra.mxu0 0.0
    %133 = vmatprep.subr.mxu0 0.0
    %134 = vmatpush1.msra.mxu0 0.0
    %135 = vmatprep.subr.mxu0 0.0
    %136 = vmatpush1.msra.mxu0 0.0
    %137 = vmatprep.subr.mxu0 0.0
    %138 = vmatpush1.msra.mxu0 0.0
    %139 = vmatprep.subr.mxu0 0.0
    %140 = vmatpush1.msra.mxu0 0.0
    %141 = vmatprep.subr.mxu0 0.0
    %142 = vmatpush1.msra.mxu0 0.0
    %143 = vmatprep.subr.mxu0 0.0
    %144 = vmatpush1.msra.mxu0 0.0
    %145 = vmatprep.subr.mxu0 0.0
    %146 = vmatpush1.msra.mxu0 0.0
    %147 = vmatprep.mubr.f32.mxu0 0.0
    %148 = vmatmul.mubr.f32.gmra.mrb[0].mxu0 %v75
    %v149 = vpop.f32.mrb[0].mxu0
    %v150 = vadd.f32 0.0, %v149
    %v151 = vpop.f32.mrb[0].mxu0
    %152 = vmatprep.mubr.f32.mxu0 0.0
    %153 = vmatmul.mubr.f32.gmra.mrb[0].mxu0 %v76
    %v154 = vpop.f32.mrb[0].mxu0
    %v155 = vadd.f32 0.0, %v154
    %v156 = vpop.f32.mrb[0].mxu0
    %157 = vmatprep.mubr.f32.mxu0 0.0
    %158 = vmatmul.mubr.f32.gmra.mrb[0].mxu0 %v77
    %v159 = vpop.f32.mrb[0].mxu0
    %v160 = vadd.f32 0.0, %v159
    %v161 = vpop.f32.mrb[0].mxu0
    %162 = vmatprep.mubr.f32.mxu0 0.0
    %163 = vmatmul.mubr.f32.gmra.mrb[0].mxu0 %v78
    %v164 = vpop.f32.mrb[0].mxu0
    %v165 = vadd.f32 0.0, %v164
    %v166 = vpop.f32.mrb[0].mxu0
    %167 = vmatprep.mubr.f32.mxu0 0.0
    %168 = vmatmul.mubr.f32.gmra.mrb[0].mxu0 %v79
    %v169 = vpop.f32.mrb[0].mxu0
    %v170 = vadd.f32 0.0, %v169
    %v171 = vpop.f32.mrb[0].mxu0
    %172 = vmatprep.mubr.f32.mxu0 0.0
    %173 = vmatmul.mubr.f32.gmra.mrb[0].mxu0 %v80
    %v174 = vpop.f32.mrb[0].mxu0
    %v175 = vadd.f32 0.0, %v174
    %v176 = vpop.f32.mrb[0].mxu0
    %177 = vmatprep.mubr.f32.mxu0 0.0
    %178 = vmatmul.mubr.f32.gmra.mrb[0].mxu0 %v81
    %v179 = vpop.f32.mrb[0].mxu0
    %v180 = vadd.f32 0.0, %v179
    %v181 = vpop.f32.mrb[0].mxu0
    %182 = vmatprep.mubr.f32.mxu0 0.0
    %183 = vmatmul.mubr.f32.gmra.mrb[0].mxu0 %v82
    %v184 = vpop.f32.mrb[0].mxu0
    %v185 = vadd.f32 0.0, %v184
    %v186 = vpop.f32.mrb[0].mxu0
    %187 = vdwg.mxu0
    %188 = vst [vmem:[#allocation8] sm:$0xff] %v150
    %189 = vst [vmem:[#allocation8 + $0x8] sm:$0xff] %v155
    %190 = vst [vmem:[#allocation8 + $0x10] sm:$0xff] %v160
    %191 = vst [vmem:[#allocation8 + $0x18] sm:$0xff] %v165
    %192 = vst [vmem:[#allocation8 + $0x20] sm:$0xff] %v170
    %193 = vst [vmem:[#allocation8 + $0x28] sm:$0xff] %v175
    %194 = vst [vmem:[#allocation8 + $0x30] sm:$0xff] %v180
    %195 = vst [vmem:[#allocation8 + $0x38] sm:$0xff] %v185
    %v196 = vld [vmem:[#allocation7] sm:$0xff]
    %v197 = vld [vmem:[#allocation7 + $0x8] sm:$0xff]
    %v198 = vld [vmem:[#allocation7 + $0x10] sm:$0xff]
    %v199 = vld [vmem:[#allocation7 + $0x18] sm:$0xff]
    %200 = vmatprep.subr.mxu0 0.0
    %201 = vmatpush1.msra.mxu0 %v59
    %202 = vmatprep.subr.mxu0 0.0
    %203 = vmatpush1.msra.mxu0 %v60
    %204 = vmatprep.subr.mxu0 0.0
    %205 = vmatpush1.msra.mxu0 %v61
    %206 = vmatprep.subr.mxu0 0.0
    %207 = vmatpush1.msra.mxu0 %v62
    %208 = vmatprep.subr.mxu0 0.0
    %209 = vmatpush1.msra.mxu0 %v63
    %210 = vmatprep.subr.mxu0 0.0
    %211 = vmatpush1.msra.mxu0 %v64
    %212 = vmatprep.subr.mxu0 0.0
    %213 = vmatpush1.msra.mxu0 %v65
    %214 = vmatprep.subr.mxu0 0.0
    %215 = vmatpush1.msra.mxu0 %v66
    %216 = vmatprep.subr.mxu0 0.0
    %217 = vmatpush1.msra.mxu0 %v67
    %218 = vmatprep.subr.mxu0 0.0
    %219 = vmatpush1.msra.mxu0 %v68
    %220 = vmatprep.subr.mxu0 0.0
    %221 = vmatpush1.msra.mxu0 %v69
    %222 = vmatprep.subr.mxu0 0.0
    %223 = vmatpush1.msra.mxu0 %v70
    %224 = vmatprep.subr.mxu0 0.0
    %225 = vmatpush1.msra.mxu0 %v71
    %226 = vmatprep.subr.mxu0 0.0
    %227 = vmatpush1.msra.mxu0 %v72
    %228 = vmatprep.subr.mxu0 0.0
    %229 = vmatpush1.msra.mxu0 %v73
    %230 = vmatprep.subr.mxu0 0.0
    %231 = vmatpush1.msra.mxu0 %v74
    %232 = vmatprep.subr.mxu0 0.0
    %233 = vmatpush1.msra.mxu0 0.0
    %234 = vmatprep.subr.mxu0 0.0
    %235 = vmatpush1.msra.mxu0 0.0
    %236 = vmatprep.subr.mxu0 0.0
    %237 = vmatpush1.msra.mxu0 0.0
    %238 = vmatprep.subr.mxu0 0.0
    %239 = vmatpush1.msra.mxu0 0.0
    %240 = vmatprep.subr.mxu0 0.0
    %241 = vmatpush1.msra.mxu0 0.0
    %242 = vmatprep.subr.mxu0 0.0
    %243 = vmatpush1.msra.mxu0 0.0
    %244 = vmatprep.subr.mxu0 0.0
    %245 = vmatpush1.msra.mxu0 0.0
    %246 = vmatprep.subr.mxu0 0.0
    %247 = vmatpush1.msra.mxu0 0.0
    %248 = vmatprep.subr.mxu0 0.0
    %249 = vmatpush1.msra.mxu0 0.0
    %250 = vmatprep.subr.mxu0 0.0
    %251 = vmatpush1.msra.mxu0 0.0
    %252 = vmatprep.subr.mxu0 0.0
    %253 = vmatpush1.msra.mxu0 0.0
    %254 = vmatprep.subr.mxu0 0.0
    %255 = vmatpush1.msra.mxu0 0.0
    %256 = vmatprep.subr.mxu0 0.0
    %257 = vmatpush1.msra.mxu0 0.0
    %258 = vmatprep.subr.mxu0 0.0
    %259 = vmatpush1.msra.mxu0 0.0
    %260 = vmatprep.subr.mxu0 0.0
    %261 = vmatpush1.msra.mxu0 0.0
    %262 = vmatprep.subr.mxu0 0.0
    %263 = vmatpush1.msra.mxu0 0.0
    %264 = vmatprep.mubr.f32.mxu0 0.0
    %265 = vmatmul.mubr.f32.gmra.mrb[0].mxu0 %v196
    %v266 = vpop.f32.mrb[0].mxu0
    %v267 = vadd.f32 0.0, %v266
    %v268 = vpop.f32.mrb[0].mxu0
    %269 = vmatprep.mubr.f32.mxu0 0.0
    %270 = vmatmul.mubr.f32.gmra.mrb[0].mxu0 %v197
    %v271 = vpop.f32.mrb[0].mxu0
    %v272 = vadd.f32 0.0, %v271
    %v273 = vpop.f32.mrb[0].mxu0
    %274 = vmatprep.mubr.f32.mxu0 0.0
    %275 = vmatmul.mubr.f32.gmra.mrb[0].mxu0 %v198
    %v276 = vpop.f32.mrb[0].mxu0
    %v277 = vadd.f32 0.0, %v276
    %v278 = vpop.f32.mrb[0].mxu0
    %279 = vmatprep.mubr.f32.mxu0 0.0
    %280 = vmatmul.mubr.f32.gmra.mrb[0].mxu0 %v199
    %v281 = vpop.f32.mrb[0].mxu0
    %v282 = vadd.f32 0.0, %v281
    %v283 = vpop.f32.mrb[0].mxu0
    %284 = vdwg.mxu0
    %285 = vst [vmem:[#allocation9] sm:$0xff] %v267
    %286 = vst [vmem:[#allocation9 + $0x8] sm:$0xff] %v272
    %287 = vst [vmem:[#allocation9 + $0x10] sm:$0xff] %v277
    %288 = vst [vmem:[#allocation9 + $0x18] sm:$0xff] %v282
    // Predicated region
    $region26: #{tpu_custom_call.1} parent=1 // pred_check
      _
    $region27: #{tpu_custom_call.1} parent=1 // pred_check_branch
      %290 = sbr.rel (0) target = $region29
    $region28: #{tpu_custom_call.1} parent=1 // pred_region
      %s292 = ssub.s32 1024, 1024
      %293 = vsyncadd [#allocation4], %s292
      %s294 = sshll.u32 [#allocation8], 4
      %s295 = int_to_ptr.vmem [resolvable:$true] %s294
      %300 = dma.vmem_to_hbm [thread:$0]  %s295, 1024, %s3, [#allocation4], 128, 128, 8
    $region29: #{tpu_custom_call.1} parent=1 // pred_fallthru
      _
    // Predicated region
    $region30: #{tpu_custom_call.1} parent=1 // pred_check
      _
    $region31: #{tpu_custom_call.1} parent=1 // pred_check_branch
      %302 = sbr.rel (0) target = $region33
    $region32: #{tpu_custom_call.1} parent=1 // pred_region
      %s304 = ssub.s32 512, 512
      %305 = vsyncadd [#allocation10], %s304
      %s306 = sshll.u32 [#allocation9], 4
      %s307 = int_to_ptr.vmem [resolvable:$true] %s306
      %312 = dma.vmem_to_hbm [thread:$0]  %s307, 512, %s4, [#allocation10], 128, 128, 8
    $region33: #{tpu_custom_call.1} parent=1 // pred_fallthru
      _
    // Predicated region
    $region34: #{tpu_custom_call.1} parent=1 // pred_check
      _
    $region35: #{tpu_custom_call.1} parent=1 // pred_check_branch
      %314 = sbr.rel (0) target = $region37
    $region36: #{tpu_custom_call.1} parent=1 // pred_region
      %315 = dma.done [#allocation4], 1024
    $region37: #{tpu_custom_call.1} parent=1 // pred_fallthru
      _
    // Predicated region
    $region38: #{tpu_custom_call.1} parent=1 // pred_check
      _
    $region39: #{tpu_custom_call.1} parent=1 // pred_check_branch
      %317 = sbr.rel (0) target = $region41
    $region40: #{tpu_custom_call.1} parent=1 // pred_region
      %318 = dma.done [#allocation10], 512
    $region41: #{tpu_custom_call.1} parent=1 // pred_fallthru
      _
    %319 = vsyncpa [#allocation3], 1
    %320 = vsyncpa [#allocation6], 1
    %321 = vsyncpa [#allocation4], 1
    %322 = vsyncpa [#allocation10], 1

</llo_original>
